<compile_context>
chip_gen: v5e
topology: v5e:2x2
jax: 0.10.0
libtpu: 0.0.40
codegen_flags: <defaults>
</compile_context>

<pallas_src>
import numpy as np
import jax
import jax.numpy as jnp
from jax import lax
from jax.experimental import pallas as pl
from jax.experimental.pallas import tpu as pltpu

IMPOSSIBLE = -10000.0


# ----------------------------- Fused Pallas kernel ---------------------------

def _bilstm_crf_kernel(x_ref, len_ref,
                       wih_f_ref, whh_f_ref, b_f_ref,
                       wih_b_ref, whh_b_ref, b_b_ref,
                       fcw_f_ref, fcw_b_ref, fcb_ref, trans_ref,
                       bps_ref, best_score_ref, best_tag_ref,
                       gx_f_ref, gx_b_ref, out_f_ref, out_b_ref, emit_ref):
    """One batch tile: BiLSTM recurrence + CRF fc + Viterbi forward pass.

    x_ref:    [L*TB, E]  bf16, time-major rows (row = t*TB + b)
    len_ref:  [TB, 1]    int32 sequence lengths (right-padded input)
    w*_ref:   LSTM weights [E|Hd, 4*Hd] bf16, biases [1, 4*Hd] f32
    fcw_*:    [Hd, C] bf16 (fc weight split per direction), fcb [1, C] f32
    trans:    [C, C] f32,  trans[j, i] = score of transition i -> j
    outputs:  bps [L*TB, C] i32, best_score [TB, 1] f32, best_tag [TB, 1] i32
    scratch:  gx_f/gx_b [L*TB, 4Hd] f32, out_f/out_b [L*TB, Hd] f32,
              emit [L*TB, C] f32
    """
    LB, _E = x_ref.shape
    TB = len_ref.shape[0]
    L = LB // TB
    Hd = whh_f_ref.shape[0]
    C = trans_ref.shape[0]
    start_idx = C - 2
    stop_idx = C - 1

    lengths = len_ref[...]                                   # [TB, 1] int32

    def rows(t):
        start = t * TB
        if TB % 8 == 0:
            start = pl.multiple_of(start, 8)
        return pl.ds(start, TB)

    # ---- Hoisted input projections: one tall MXU matmul per direction ------
    x = x_ref[...]                                           # [L*TB, E] bf16
    gx_f_ref[...] = (jnp.dot(x, wih_f_ref[...],
                             preferred_element_type=jnp.float32) + b_f_ref[...])
    gx_b_ref[...] = (jnp.dot(x, wih_b_ref[...],
                             preferred_element_type=jnp.float32) + b_b_ref[...])

    whh_f = whh_f_ref[...]                                   # [Hd, 4Hd] bf16
    whh_b = whh_b_ref[...]

    def step(gx_t, mask_t, h, c, whh):
        # Recurrent part only: h @ W_hh (bf16 MXU), gate math in f32.
        gates = gx_t + jnp.dot(h.astype(whh.dtype), whh,
                               preferred_element_type=jnp.float32)
        # PyTorch gate order i, f, g, o.  (For real sizes keep Hd % 128 == 0 so
        # these slices sit on lane boundaries.)
        i = jax.nn.sigmoid(gates[:, 0:Hd])
        f = jax.nn.sigmoid(gates[:, Hd:2 * Hd])
        g = jnp.tanh(gates[:, 2 * Hd:3 * Hd])
        o = jax.nn.sigmoid(gates[:, 3 * Hd:4 * Hd])
        c_new = f * c + i * g
        h_new = o * jnp.tanh(c_new)
        # Padded steps: freeze state, emit zeros (pad_packed_sequence semantics).
        h_keep = jnp.where(mask_t, h_new, h)
        c_keep = jnp.where(mask_t, c_new, c)
        out = jnp.where(mask_t, h_new, 0.0)
        return out, h_keep, c_keep

    h0 = jnp.zeros((TB, Hd), jnp.float32)
    c0 = jnp.zeros((TB, Hd), jnp.float32)

    def fwd_body(t, carry):
        h, c = carry
        mask_t = lengths > t                                 # [TB, 1] bool
        r = rows(t)
        out, h, c = step(gx_f_ref[r, :], mask_t, h, c, whh_f)
        out_f_ref[r, :] = out
        return (h, c)

    lax.fori_loop(0, L, fwd_body, (h0, c0))

    def bwd_body(s, carry):
        h, c = carry
        t = L - 1 - s
        mask_t = lengths > t
        r = rows(t)
        out, h, c = step(gx_b_ref[r, :], mask_t, h, c, whh_b)
        out_b_ref[r, :] = out
        return (h, c)

    lax.fori_loop(0, L, bwd_body, (h0, c0))

    # ---- Hoisted CRF emission projection (fc): tall matmuls, no concat -----
    emit_ref[...] = (
        jnp.dot(out_f_ref[...].astype(fcw_f_ref.dtype), fcw_f_ref[...],
                preferred_element_type=jnp.float32)
        + jnp.dot(out_b_ref[...].astype(fcw_b_ref.dtype), fcw_b_ref[...],
                  preferred_element_type=jnp.float32)
        + fcb_ref[...])

    # ---- Viterbi forward recursion ------------------------------------------
    trans = trans_ref[...]                                   # [C, C]
    col2 = lax.broadcasted_iota(jnp.int32, (TB, C), 1)
    # Hoisted out of the loop (broadcast_in_dim is not CSE'd by JAX).
    iota_prev = lax.broadcasted_iota(jnp.int32, (TB, C, C), 2)
    score0 = jnp.where(col2 == start_idx, 0.0, IMPOSSIBLE).astype(jnp.float32)

    def vit_body(t, score):
        mask_t = lengths > t                                 # [TB, 1] bool
        emit = emit_ref[rows(t), :]                          # [TB, C]
        acc = score[:, None, :] + trans[None, :, :]          # [TB, Cnext, Cprev]
        acc_max = jnp.max(acc, axis=-1)                      # [TB, C]
        # compare + min-of-iota argmax (kept instead of jnp.argmax for robust
        # Mosaic lowering); iota is loop-invariant.
        bp = jnp.min(jnp.where(acc >= acc_max[:, :, None], iota_prev, C), axis=-1)
        bps_ref[rows(t), :] = bp.astype(jnp.int32)
        new_score = acc_max + emit
        return jnp.where(mask_t, new_score, score)

    score = lax.fori_loop(0, L, vit_body, score0)

    final = score + trans[stop_idx:stop_idx + 1, :]          # [TB, C]
    best = jnp.max(final, axis=-1, keepdims=True)            # [TB, 1]
    best_score_ref[...] = best
    best_tag = jnp.min(jnp.where(final >= best, col2, C), axis=-1, keepdims=True)
    best_tag_ref[...] = best_tag.astype(jnp.int32)


# ------------------------------- Wrapper -------------------------------------

def bilstm_forward(sentences, params, *, batch_tile=None):
    """Equivalent of BiLSTM.forward(x) -> (best_score [B], decode artifacts)."""
    B, L = sentences.shape
    E = params["embedding"].shape[1]
    Hd = params["whh_f"].shape[0]
    C = params["transitions"].shape[0]

    if batch_tile is None:
        batch_tile = B
    assert B % batch_tile == 0
    assert batch_tile == B or batch_tile % 8 == 0, \
        "batch_tile must equal B or be a multiple of 8"
    TB = batch_tile
    NB = B // TB

    masks = sentences > 0                                              # [B, L]
    lengths = jnp.sum(masks, axis=1).astype(jnp.int32)[:, None]        # [B, 1]

    # Embedding lookup (gather) kept as JAX glue outside the kernel.
    embeds = jnp.take(params["embedding"], sentences, axis=0)          # [B, L, E]

    # Per-tile time-major 2-D slab: row = t*TB + b_local.  Layout plumbing is
    # done in the wrapper so all in-kernel matmuls are plain 2-D dots.
    x = (embeds.reshape(NB, TB, L, E)
               .transpose(0, 2, 1, 3)                                  # [NB, L, TB, E]
               .reshape(NB, L * TB, E)
               .astype(jnp.bfloat16))

    bf16 = lambda a: a.astype(jnp.bfloat16)
    wih_f, whh_f = bf16(params["wih_f"]), bf16(params["whh_f"])
    wih_b, whh_b = bf16(params["wih_b"]), bf16(params["whh_b"])
    fcw_f = bf16(params["fc_w"][:Hd])                                  # [Hd, C]
    fcw_b = bf16(params["fc_w"][Hd:])                                  # [Hd, C]
    b_f, b_b = params["b_f"], params["b_b"]
    fcb = params["fc_b"]
    trans = params["transitions"]

    full = lambda a: pl.BlockSpec(a.shape, lambda i, _a=a: (0,) * _a.ndim)

    bps_t, best_score, best_tag = pl.pallas_call(
        _bilstm_crf_kernel,
        grid=(NB,),
        in_specs=[
            pl.BlockSpec((None, L * TB, E), lambda i: (i, 0, 0)),      # x tile
            pl.BlockSpec((TB, 1), lambda i: (i, 0)),                   # lengths
            full(wih_f), full(whh_f), full(b_f),
            full(wih_b), full(whh_b), full(b_b),
            full(fcw_f), full(fcw_b), full(fcb), full(trans),
        ],
        out_specs=(
            pl.BlockSpec((None, L * TB, C), lambda i: (i, 0, 0)),      # bps
            pl.BlockSpec((TB, 1), lambda i: (i, 0)),                   # best_score
            pl.BlockSpec((TB, 1), lambda i: (i, 0)),                   # best_tag
        ),
        out_shape=(
            jax.ShapeDtypeStruct((NB, L * TB, C), jnp.int32),
            jax.ShapeDtypeStruct((B, 1), jnp.float32),
            jax.ShapeDtypeStruct((B, 1), jnp.int32),
        ),
        scratch_shapes=[
            pltpu.VMEM((L * TB, 4 * Hd), jnp.float32),   # gx forward
            pltpu.VMEM((L * TB, 4 * Hd), jnp.float32),   # gx backward
            pltpu.VMEM((L * TB, Hd), jnp.float32),       # lstm out forward
            pltpu.VMEM((L * TB, Hd), jnp.float32),       # lstm out backward
            pltpu.VMEM((L * TB, C), jnp.float32),        # emissions
        ],
        compiler_params=pltpu.CompilerParams(
            dimension_semantics=("parallel",),           # batch tiles -> megacore
        ),
    )(x, lengths, wih_f, whh_f, b_f, wih_b, whh_b, b_b, fcw_f, fcw_b, fcb, trans)

    # Un-flatten backpointers back to [B, L, C] for host-side backtracking.
    bps = (bps_t.reshape(NB, L, TB, C)
                .transpose(0, 2, 1, 3)
                .reshape(B, L, C))

    return best_score[:, 0], best_tag[:, 0], bps, masks


def viterbi_backtrack(best_tag, bps, masks):
    # Backtracking mirrors the PyTorch host-side numpy loop exactly.
    # (Data-dependent per-sequence python loop — kept on host like the reference.)
    bps_np = np.asarray(bps)                      # [B, L, C]
    masks_np = np.asarray(masks)
    best_tag_np = np.asarray(best_tag)
    best_paths = []
    for b in range(bps_np.shape[0]):
        tag = int(best_tag_np[b])
        seq_len = int(masks_np[b].sum())
        path = [tag]
        for bps_t in reversed(bps_np[b, :seq_len]):
            tag = int(bps_t[tag])
            path.append(tag)
        best_paths.append(path[-2::-1])
    return best_paths


# ------------------------------ Init & main ----------------------------------

def init_params(key, vocab_size, tagset_size, embedding_size, hidden_size):
    Hd = hidden_size // 2
    C = tagset_size + 2          # + START, STOP
    ks = jax.random.split(key, 10)

    def rn(k, shape, scale=0.1):
        return jax.random.normal(k, shape, jnp.float32) * scale

    params = dict(
        embedding=rn(ks[0], (vocab_size, embedding_size), 1.0),
        wih_f=rn(ks[1], (embedding_size, 4 * Hd)),
        whh_f=rn(ks[2], (Hd, 4 * Hd)),
        b_f=rn(ks[3], (1, 4 * Hd)),
        wih_b=rn(ks[4], (embedding_size, 4 * Hd)),
        whh_b=rn(ks[5], (Hd, 4 * Hd)),
        b_b=rn(ks[6], (1, 4 * Hd)),
        fc_w=rn(ks[7], (hidden_size, C)),
        fc_b=rn(ks[8], (1, C)),
    )
    trans = jax.random.normal(ks[9], (C, C), jnp.float32)
    trans = trans.at[C - 2, :].set(IMPOSSIBLE)   # no transitions into START
    trans = trans.at[:, C - 1].set(IMPOSSIBLE)   # no transitions out of STOP
    params["transitions"] = trans
    return params


if __name__ == "__main__":
    vocab_size, tagset_size = 20, 5
    embedding_size, hidden_size = 16, 32
    B, L = 2, 8

    key = jax.random.PRNGKey(0)
    pkey, skey = jax.random.split(key)
    params = init_params(pkey, vocab_size, tagset_size, embedding_size, hidden_size)

    # Right-padded integer sentences (0 = pad), lengths [8, 5].
    toks = jax.random.randint(skey, (B, L), 1, vocab_size)
    lengths = jnp.array([L, 5])
    pos = jnp.arange(L)[None, :]
    sentences = jnp.where(pos < lengths[:, None], toks, 0).astype(jnp.int32)

    best_score, best_tag, bps, masks = bilstm_forward(sentences, params)
    jax.block_until_ready((best_score, best_tag, bps))

    best_paths = viterbi_backtrack(best_tag, bps, masks)
    assert best_score.shape == (B,)
    assert len(best_paths) == B
    masks_np = np.asarray(masks)
    assert all(len(p) == int(masks_np[b].sum()) for b, p in enumerate(best_paths))
    print("KERNEL_OK")
</pallas_src>

<mosaic_0001>
module attributes {stable_mosaic.version = 11 : i64} {
  func.func @_bilstm_crf_kernel(%arg0: i32, %arg1: memref<1x16x16xbf16, #tpu.memory_space<vmem>>, %arg2: memref<2x1xi32, #tpu.memory_space<vmem>>, %arg3: memref<16x64xbf16, #tpu.memory_space<vmem>>, %arg4: memref<16x64xbf16, #tpu.memory_space<vmem>>, %arg5: memref<1x64xf32, #tpu.memory_space<vmem>>, %arg6: memref<16x64xbf16, #tpu.memory_space<vmem>>, %arg7: memref<16x64xbf16, #tpu.memory_space<vmem>>, %arg8: memref<1x64xf32, #tpu.memory_space<vmem>>, %arg9: memref<16x7xbf16, #tpu.memory_space<vmem>>, %arg10: memref<16x7xbf16, #tpu.memory_space<vmem>>, %arg11: memref<1x7xf32, #tpu.memory_space<vmem>>, %arg12: memref<7x7xf32, #tpu.memory_space<vmem>>, %arg13: memref<1x16x7xi32, #tpu.memory_space<vmem>>, %arg14: memref<2x1xf32, #tpu.memory_space<vmem>>, %arg15: memref<2x1xi32, #tpu.memory_space<vmem>>, %arg16: memref<16x64xf32, #tpu.memory_space<vmem>>, %arg17: memref<16x64xf32, #tpu.memory_space<vmem>>, %arg18: memref<16x16xf32, #tpu.memory_space<vmem>>, %arg19: memref<16x16xf32, #tpu.memory_space<vmem>>, %arg20: memref<16x7xf32, #tpu.memory_space<vmem>>) attributes {dimension_semantics = [#tpu.dimension_semantics<parallel>], iteration_bounds = array<i64: 1>, scalar_prefetch = 0 : i64, scratch_operands = 5 : i64, tpu.core_type = #tpu.core_type<tc>, window_params = [{transform_indices = @transform_0, window_bounds = array<i64: 1, 16, 16>}, {transform_indices = @transform_1, window_bounds = array<i64: 2, 1>}, {pipeline_mode = #tpu.pipeline_mode<synchronous>, transform_indices = @transform_2, window_bounds = array<i64: 16, 64>}, {pipeline_mode = #tpu.pipeline_mode<synchronous>, transform_indices = @transform_3, window_bounds = array<i64: 16, 64>}, {pipeline_mode = #tpu.pipeline_mode<synchronous>, transform_indices = @transform_4, window_bounds = array<i64: 1, 64>}, {pipeline_mode = #tpu.pipeline_mode<synchronous>, transform_indices = @transform_5, window_bounds = array<i64: 16, 64>}, {pipeline_mode = #tpu.pipeline_mode<synchronous>, transform_indices = @transform_6, window_bounds = array<i64: 16, 64>}, {pipeline_mode = #tpu.pipeline_mode<synchronous>, transform_indices = @transform_7, window_bounds = array<i64: 1, 64>}, {pipeline_mode = #tpu.pipeline_mode<synchronous>, transform_indices = @transform_8, window_bounds = array<i64: 16, 7>}, {pipeline_mode = #tpu.pipeline_mode<synchronous>, transform_indices = @transform_9, window_bounds = array<i64: 16, 7>}, {pipeline_mode = #tpu.pipeline_mode<synchronous>, transform_indices = @transform_10, window_bounds = array<i64: 1, 7>}, {pipeline_mode = #tpu.pipeline_mode<synchronous>, transform_indices = @transform_11, window_bounds = array<i64: 7, 7>}, {transform_indices = @transform_12, window_bounds = array<i64: 1, 16, 7>}, {transform_indices = @transform_13, window_bounds = array<i64: 2, 1>}, {transform_indices = @transform_14, window_bounds = array<i64: 2, 1>}]} {
    %c0 = arith.constant 0 : index
    %c0_0 = arith.constant 0 : index
    %0 = vector.load %arg2[%c0, %c0_0] : memref<2x1xi32, #tpu.memory_space<vmem>>, vector<2x1xi32>
    %c0_1 = arith.constant 0 : index
    %c0_2 = arith.constant 0 : index
    %c0_3 = arith.constant 0 : index
    %1 = vector.load %arg1[%c0_1, %c0_2, %c0_3] : memref<1x16x16xbf16, #tpu.memory_space<vmem>>, vector<1x16x16xbf16>
    %2 = vector.shape_cast %1 : vector<1x16x16xbf16> to vector<16x16xbf16>
    %c0_4 = arith.constant 0 : index
    %c0_5 = arith.constant 0 : index
    %3 = vector.load %arg3[%c0_4, %c0_5] : memref<16x64xbf16, #tpu.memory_space<vmem>>, vector<16x64xbf16>
    %cst = arith.constant dense<0.000000e+00> : vector<16x64xf32>
    %4 = tpu.matmul %2, %3, %cst {dimension_numbers = #tpu.dot_dimension_numbers<[1], [0], [0], [1], [0, 0, 1, 1], [], []>} : vector<16x16xbf16>, vector<16x64xbf16>, vector<16x64xf32> -> vector<16x64xf32>
    %c0_6 = arith.constant 0 : index
    %c0_7 = arith.constant 0 : index
    %5 = vector.load %arg5[%c0_6, %c0_7] : memref<1x64xf32, #tpu.memory_space<vmem>>, vector<1x64xf32>
    %6 = vector.broadcast %5 : vector<1x64xf32> to vector<16x64xf32>
    %7 = arith.addf %4, %6 : vector<16x64xf32>
    %c0_8 = arith.constant 0 : index
    %c0_9 = arith.constant 0 : index
    %8 = vector.load %arg16[%c0_8, %c0_9] : memref<16x64xf32, #tpu.memory_space<vmem>>, vector<16x64xf32>
    tpu.vector_store %arg16[%c0_8, %c0_9], %7 {strides = array<i32>} : memref<16x64xf32, #tpu.memory_space<vmem>>, vector<16x64xf32>,
    %c0_10 = arith.constant 0 : index
    %c0_11 = arith.constant 0 : index
    %9 = vector.load %arg6[%c0_10, %c0_11] : memref<16x64xbf16, #tpu.memory_space<vmem>>, vector<16x64xbf16>
    %cst_12 = arith.constant dense<0.000000e+00> : vector<16x64xf32>
    %10 = tpu.matmul %2, %9, %cst_12 {dimension_numbers = #tpu.dot_dimension_numbers<[1], [0], [0], [1], [0, 0, 1, 1], [], []>} : vector<16x16xbf16>, vector<16x64xbf16>, vector<16x64xf32> -> vector<16x64xf32>
    %c0_13 = arith.constant 0 : index
    %c0_14 = arith.constant 0 : index
    %11 = vector.load %arg8[%c0_13, %c0_14] : memref<1x64xf32, #tpu.memory_space<vmem>>, vector<1x64xf32>
    %12 = vector.broadcast %11 : vector<1x64xf32> to vector<16x64xf32>
    %13 = arith.addf %10, %12 : vector<16x64xf32>
    %c0_15 = arith.constant 0 : index
    %c0_16 = arith.constant 0 : index
    %14 = vector.load %arg17[%c0_15, %c0_16] : memref<16x64xf32, #tpu.memory_space<vmem>>, vector<16x64xf32>
    tpu.vector_store %arg17[%c0_15, %c0_16], %13 {strides = array<i32>} : memref<16x64xf32, #tpu.memory_space<vmem>>, vector<16x64xf32>,
    %c0_17 = arith.constant 0 : index
    %c0_18 = arith.constant 0 : index
    %15 = vector.load %arg4[%c0_17, %c0_18] : memref<16x64xbf16, #tpu.memory_space<vmem>>, vector<16x64xbf16>
    %c0_19 = arith.constant 0 : index
    %c0_20 = arith.constant 0 : index
    %16 = vector.load %arg7[%c0_19, %c0_20] : memref<16x64xbf16, #tpu.memory_space<vmem>>, vector<16x64xbf16>
    %cst_21 = arith.constant 0.000000e+00 : f32
    %17 = vector.broadcast %cst_21 : f32 to vector<2x16xf32>
    %cst_22 = arith.constant 0.000000e+00 : f32
    %18 = vector.broadcast %cst_22 : f32 to vector<2x16xf32>
    %c0_i32 = arith.constant 0 : i32
    %c8_i32 = arith.constant 8 : i32
    %19 = arith.addi %c0_i32, %c8_i32 : i32
    %c1_i32 = arith.constant 1 : i32
    %20:2 = scf.for %arg21 = %c0_i32 to %19 step %c1_i32 iter_args(%arg22 = %17, %arg23 = %18) -> (vector<2x16xf32>, vector<2x16xf32>)  : i32 {
      %59 = vector.broadcast %arg21 : i32 to vector<2x1xi32>
      %60 = arith.cmpi sgt, %0, %59 : vector<2x1xi32>
      %c2_i32 = arith.constant 2 : i32
      %61 = arith.muli %arg21, %c2_i32 : i32
      %62 = arith.index_cast %61 : i32 to index
      %c0_56 = arith.constant 0 : index
      %63 = vector.load %arg16[%62, %c0_56] : memref<16x64xf32, #tpu.memory_space<vmem>>, vector<2x64xf32>
      %64 = arith.truncf %arg22 : vector<2x16xf32> to vector<2x16xbf16>
      %cst_57 = arith.constant dense<0.000000e+00> : vector<2x64xf32>
      %65 = tpu.matmul %64, %15, %cst_57 {dimension_numbers = #tpu.dot_dimension_numbers<[1], [0], [0], [1], [0, 0, 1, 1], [], []>} : vector<2x16xbf16>, vector<16x64xbf16>, vector<2x64xf32> -> vector<2x64xf32>
      %66 = arith.addf %63, %65 : vector<2x64xf32>
      %67 = vector.extract_strided_slice %66 {offsets = [0, 0], sizes = [2, 16], strides = [1, 1]} : vector<2x64xf32> to vector<2x16xf32>
      %68 = arith.negf %67 : vector<2x16xf32>
      %69 = math.exp %68 : vector<2x16xf32>
      %cst_58 = arith.constant 1.000000e+00 : f32
      %70 = vector.broadcast %cst_58 : f32 to vector<2x16xf32>
      %71 = arith.addf %70, %69 : vector<2x16xf32>
      %72 = arith.divf %70, %71 : vector<2x16xf32>
      %73 = vector.extract_strided_slice %66 {offsets = [0, 16], sizes = [2, 16], strides = [1, 1]} : vector<2x64xf32> to vector<2x16xf32>
      %74 = arith.negf %73 : vector<2x16xf32>
      %75 = math.exp %74 : vector<2x16xf32>
      %cst_59 = arith.constant 1.000000e+00 : f32
      %76 = vector.broadcast %cst_59 : f32 to vector<2x16xf32>
      %77 = arith.addf %76, %75 : vector<2x16xf32>
      %78 = arith.divf %76, %77 : vector<2x16xf32>
      %79 = vector.extract_strided_slice %66 {offsets = [0, 32], sizes = [2, 16], strides = [1, 1]} : vector<2x64xf32> to vector<2x16xf32>
      %80 = math.tanh %79 : vector<2x16xf32>
      %81 = vector.extract_strided_slice %66 {offsets = [0, 48], sizes = [2, 16], strides = [1, 1]} : vector<2x64xf32> to vector<2x16xf32>
      %82 = arith.negf %81 : vector<2x16xf32>
      %83 = math.exp %82 : vector<2x16xf32>
      %cst_60 = arith.constant 1.000000e+00 : f32
      %84 = vector.broadcast %cst_60 : f32 to vector<2x16xf32>
      %85 = arith.addf %84, %83 : vector<2x16xf32>
      %86 = arith.divf %84, %85 : vector<2x16xf32>
      %87 = arith.mulf %78, %arg23 : vector<2x16xf32>
      %88 = arith.mulf %72, %80 : vector<2x16xf32>
      %89 = arith.addf %87, %88 : vector<2x16xf32>
      %90 = math.tanh %89 : vector<2x16xf32>
      %91 = arith.mulf %86, %90 : vector<2x16xf32>
      %92 = vector.shape_cast %60 : vector<2x1xi1> to vector<2x1xi1>
      %93 = vector.broadcast %92 : vector<2x1xi1> to vector<2x16xi1>
      %94 = arith.select %93, %91, %arg22 : vector<2x16xi1>, vector<2x16xf32>
      %95 = vector.shape_cast %60 : vector<2x1xi1> to vector<2x1xi1>
      %96 = vector.broadcast %95 : vector<2x1xi1> to vector<2x16xi1>
      %97 = arith.select %96, %89, %arg23 : vector<2x16xi1>, vector<2x16xf32>
      %cst_61 = arith.constant 0.000000e+00 : f32
      %98 = vector.shape_cast %60 : vector<2x1xi1> to vector<2x1xi1>
      %99 = vector.broadcast %98 : vector<2x1xi1> to vector<2x16xi1>
      %100 = vector.broadcast %cst_61 : f32 to vector<2x16xf32>
      %101 = arith.select %99, %91, %100 : vector<2x16xi1>, vector<2x16xf32>
      %102 = arith.index_cast %61 : i32 to index
      %c0_62 = arith.constant 0 : index
      %103 = vector.load %arg18[%102, %c0_62] : memref<16x16xf32, #tpu.memory_space<vmem>>, vector<2x16xf32>
      tpu.vector_store %arg18[%102, %c0_62], %101 {strides = array<i32>} : memref<16x16xf32, #tpu.memory_space<vmem>>, vector<2x16xf32>,
      scf.yield %94, %97 : vector<2x16xf32>, vector<2x16xf32>
    }
    %c8_i32_23 = arith.constant 8 : i32
    %c0_i32_24 = arith.constant 0 : i32
    %c8_i32_25 = arith.constant 8 : i32
    %21 = arith.addi %c0_i32_24, %c8_i32_25 : i32
    %c1_i32_26 = arith.constant 1 : i32
    %22:2 = scf.for %arg21 = %c0_i32_24 to %21 step %c1_i32_26 iter_args(%arg22 = %17, %arg23 = %18) -> (vector<2x16xf32>, vector<2x16xf32>)  : i32 {
      %c7_i32_56 = arith.constant 7 : i32
      %59 = arith.subi %c7_i32_56, %arg21 : i32
      %60 = vector.broadcast %59 : i32 to vector<2x1xi32>
      %61 = arith.cmpi sgt, %0, %60 : vector<2x1xi32>
      %c2_i32 = arith.constant 2 : i32
      %62 = arith.muli %59, %c2_i32 : i32
      %63 = arith.index_cast %62 : i32 to index
      %c0_57 = arith.constant 0 : index
      %64 = vector.load %arg17[%63, %c0_57] : memref<16x64xf32, #tpu.memory_space<vmem>>, vector<2x64xf32>
      %65 = arith.truncf %arg22 : vector<2x16xf32> to vector<2x16xbf16>
      %cst_58 = arith.constant dense<0.000000e+00> : vector<2x64xf32>
      %66 = tpu.matmul %65, %16, %cst_58 {dimension_numbers = #tpu.dot_dimension_numbers<[1], [0], [0], [1], [0, 0, 1, 1], [], []>} : vector<2x16xbf16>, vector<16x64xbf16>, vector<2x64xf32> -> vector<2x64xf32>
      %67 = arith.addf %64, %66 : vector<2x64xf32>
      %68 = vector.extract_strided_slice %67 {offsets = [0, 0], sizes = [2, 16], strides = [1, 1]} : vector<2x64xf32> to vector<2x16xf32>
      %69 = arith.negf %68 : vector<2x16xf32>
      %70 = math.exp %69 : vector<2x16xf32>
      %cst_59 = arith.constant 1.000000e+00 : f32
      %71 = vector.broadcast %cst_59 : f32 to vector<2x16xf32>
      %72 = arith.addf %71, %70 : vector<2x16xf32>
      %73 = arith.divf %71, %72 : vector<2x16xf32>
      %74 = vector.extract_strided_slice %67 {offsets = [0, 16], sizes = [2, 16], strides = [1, 1]} : vector<2x64xf32> to vector<2x16xf32>
      %75 = arith.negf %74 : vector<2x16xf32>
      %76 = math.exp %75 : vector<2x16xf32>
      %cst_60 = arith.constant 1.000000e+00 : f32
      %77 = vector.broadcast %cst_60 : f32 to vector<2x16xf32>
      %78 = arith.addf %77, %76 : vector<2x16xf32>
      %79 = arith.divf %77, %78 : vector<2x16xf32>
      %80 = vector.extract_strided_slice %67 {offsets = [0, 32], sizes = [2, 16], strides = [1, 1]} : vector<2x64xf32> to vector<2x16xf32>
      %81 = math.tanh %80 : vector<2x16xf32>
      %82 = vector.extract_strided_slice %67 {offsets = [0, 48], sizes = [2, 16], strides = [1, 1]} : vector<2x64xf32> to vector<2x16xf32>
      %83 = arith.negf %82 : vector<2x16xf32>
      %84 = math.exp %83 : vector<2x16xf32>
      %cst_61 = arith.constant 1.000000e+00 : f32
      %85 = vector.broadcast %cst_61 : f32 to vector<2x16xf32>
      %86 = arith.addf %85, %84 : vector<2x16xf32>
      %87 = arith.divf %85, %86 : vector<2x16xf32>
      %88 = arith.mulf %79, %arg23 : vector<2x16xf32>
      %89 = arith.mulf %73, %81 : vector<2x16xf32>
      %90 = arith.addf %88, %89 : vector<2x16xf32>
      %91 = math.tanh %90 : vector<2x16xf32>
      %92 = arith.mulf %87, %91 : vector<2x16xf32>
      %93 = vector.shape_cast %61 : vector<2x1xi1> to vector<2x1xi1>
      %94 = vector.broadcast %93 : vector<2x1xi1> to vector<2x16xi1>
      %95 = arith.select %94, %92, %arg22 : vector<2x16xi1>, vector<2x16xf32>
      %96 = vector.shape_cast %61 : vector<2x1xi1> to vector<2x1xi1>
      %97 = vector.broadcast %96 : vector<2x1xi1> to vector<2x16xi1>
      %98 = arith.select %97, %90, %arg23 : vector<2x16xi1>, vector<2x16xf32>
      %cst_62 = arith.constant 0.000000e+00 : f32
      %99 = vector.shape_cast %61 : vector<2x1xi1> to vector<2x1xi1>
      %100 = vector.broadcast %99 : vector<2x1xi1> to vector<2x16xi1>
      %101 = vector.broadcast %cst_62 : f32 to vector<2x16xf32>
      %102 = arith.select %100, %92, %101 : vector<2x16xi1>, vector<2x16xf32>
      %103 = arith.index_cast %62 : i32 to index
      %c0_63 = arith.constant 0 : index
      %104 = vector.load %arg19[%103, %c0_63] : memref<16x16xf32, #tpu.memory_space<vmem>>, vector<2x16xf32>
      tpu.vector_store %arg19[%103, %c0_63], %102 {strides = array<i32>} : memref<16x16xf32, #tpu.memory_space<vmem>>, vector<2x16xf32>,
      scf.yield %95, %98 : vector<2x16xf32>, vector<2x16xf32>
    }
    %c8_i32_27 = arith.constant 8 : i32
    %c0_28 = arith.constant 0 : index
    %c0_29 = arith.constant 0 : index
    %23 = vector.load %arg18[%c0_28, %c0_29] : memref<16x16xf32, #tpu.memory_space<vmem>>, vector<16x16xf32>
    %24 = arith.truncf %23 : vector<16x16xf32> to vector<16x16xbf16>
    %c0_30 = arith.constant 0 : index
    %c0_31 = arith.constant 0 : index
    %25 = vector.load %arg9[%c0_30, %c0_31] : memref<16x7xbf16, #tpu.memory_space<vmem>>, vector<16x7xbf16>
    %cst_32 = arith.constant dense<0.000000e+00> : vector<16x7xf32>
    %26 = tpu.matmul %24, %25, %cst_32 {dimension_numbers = #tpu.dot_dimension_numbers<[1], [0], [0], [1], [0, 0, 1, 1], [], []>} : vector<16x16xbf16>, vector<16x7xbf16>, vector<16x7xf32> -> vector<16x7xf32>
    %c0_33 = arith.constant 0 : index
    %c0_34 = arith.constant 0 : index
    %27 = vector.load %arg19[%c0_33, %c0_34] : memref<16x16xf32, #tpu.memory_space<vmem>>, vector<16x16xf32>
    %28 = arith.truncf %27 : vector<16x16xf32> to vector<16x16xbf16>
    %c0_35 = arith.constant 0 : index
    %c0_36 = arith.constant 0 : index
    %29 = vector.load %arg10[%c0_35, %c0_36] : memref<16x7xbf16, #tpu.memory_space<vmem>>, vector<16x7xbf16>
    %cst_37 = arith.constant dense<0.000000e+00> : vector<16x7xf32>
    %30 = tpu.matmul %28, %29, %cst_37 {dimension_numbers = #tpu.dot_dimension_numbers<[1], [0], [0], [1], [0, 0, 1, 1], [], []>} : vector<16x16xbf16>, vector<16x7xbf16>, vector<16x7xf32> -> vector<16x7xf32>
    %31 = arith.addf %26, %30 : vector<16x7xf32>
    %c0_38 = arith.constant 0 : index
    %c0_39 = arith.constant 0 : index
    %32 = vector.load %arg11[%c0_38, %c0_39] : memref<1x7xf32, #tpu.memory_space<vmem>>, vector<1x7xf32>
    %33 = vector.broadcast %32 : vector<1x7xf32> to vector<16x7xf32>
    %34 = arith.addf %31, %33 : vector<16x7xf32>
    %c0_40 = arith.constant 0 : index
    %c0_41 = arith.constant 0 : index
    %35 = vector.load %arg20[%c0_40, %c0_41] : memref<16x7xf32, #tpu.memory_space<vmem>>, vector<16x7xf32>
    tpu.vector_store %arg20[%c0_40, %c0_41], %34 {strides = array<i32>} : memref<16x7xf32, #tpu.memory_space<vmem>>, vector<16x7xf32>,
    %c0_42 = arith.constant 0 : index
    %c0_43 = arith.constant 0 : index
    %36 = vector.load %arg12[%c0_42, %c0_43] : memref<7x7xf32, #tpu.memory_space<vmem>>, vector<7x7xf32>
    %37 = tpu.iota {dimensions = array<i32: 1>} : vector<2x7xi32>
    %38 = tpu.iota {dimensions = array<i32: 2>} : vector<2x7x7xi32>
    %c5_i32 = arith.constant 5 : i32
    %39 = vector.broadcast %c5_i32 : i32 to vector<2x7xi32>
    %40 = arith.cmpi eq, %37, %39 : vector<2x7xi32>
    %cst_44 = arith.constant 0.000000e+00 : f32
    %cst_45 = arith.constant -1.000000e+04 : f32
    %41 = vector.broadcast %cst_44 : f32 to vector<2x7xf32>
    %42 = vector.broadcast %cst_45 : f32 to vector<2x7xf32>
    %43 = arith.select %40, %41, %42 : vector<2x7xi1>, vector<2x7xf32>
    %c0_i32_46 = arith.constant 0 : i32
    %c8_i32_47 = arith.constant 8 : i32
    %44 = arith.addi %c0_i32_46, %c8_i32_47 : i32
    %c1_i32_48 = arith.constant 1 : i32
    %45 = scf.for %arg21 = %c0_i32_46 to %44 step %c1_i32_48 iter_args(%arg22 = %43) -> (vector<2x7xf32>)  : i32 {
      %59 = vector.broadcast %arg21 : i32 to vector<2x1xi32>
      %60 = arith.cmpi sgt, %0, %59 : vector<2x1xi32>
      %c2_i32 = arith.constant 2 : i32
      %61 = arith.muli %arg21, %c2_i32 : i32
      %62 = arith.index_cast %61 : i32 to index
      %c0_56 = arith.constant 0 : index
      %63 = vector.load %arg20[%62, %c0_56] : memref<16x7xf32, #tpu.memory_space<vmem>>, vector<2x7xf32>
      %64 = vector.shape_cast %arg22 : vector<2x7xf32> to vector<2x1x7xf32>
      %65 = vector.shape_cast %36 : vector<7x7xf32> to vector<1x7x7xf32>
      %66 = vector.broadcast %64 : vector<2x1x7xf32> to vector<2x7x7xf32>
      %67 = vector.broadcast %65 : vector<1x7x7xf32> to vector<2x7x7xf32>
      %68 = arith.addf %66, %67 : vector<2x7x7xf32>
      %cst_57 = arith.constant dense<0xFF800000> : vector<2x7xf32>
      %69 = vector.multi_reduction <maximumf>, %68, %cst_57 [2] : vector<2x7x7xf32> to vector<2x7xf32>
      %70 = vector.shape_cast %69 : vector<2x7xf32> to vector<2x7x1xf32>
      %71 = vector.broadcast %70 : vector<2x7x1xf32> to vector<2x7x7xf32>
      %72 = arith.cmpf oge, %68, %71 : vector<2x7x7xf32>
      %c7_i32_58 = arith.constant 7 : i32
      %73 = vector.broadcast %c7_i32_58 : i32 to vector<2x7x7xi32>
      %74 = arith.select %72, %38, %73 : vector<2x7x7xi1>, vector<2x7x7xi32>
      %cst_59 = arith.constant dense<2147483647> : vector<2x7xi32>
      %75 = vector.multi_reduction <minsi>, %74, %cst_59 [2] : vector<2x7x7xi32> to vector<2x7xi32>
      %c2_i32_60 = arith.constant 2 : i32
      %76 = arith.muli %arg21, %c2_i32_60 : i32
      %c0_61 = arith.constant 0 : index
      %77 = arith.index_cast %76 : i32 to index
      %c0_62 = arith.constant 0 : index
      %78 = vector.load %arg13[%c0_61, %77, %c0_62] : memref<1x16x7xi32, #tpu.memory_space<vmem>>, vector<1x2x7xi32>
      %79 = vector.shape_cast %78 : vector<1x2x7xi32> to vector<2x7xi32>
      %80 = vector.shape_cast %75 : vector<2x7xi32> to vector<1x2x7xi32>
      tpu.vector_store %arg13[%c0_61, %77, %c0_62], %80 {strides = array<i32>} : memref<1x16x7xi32, #tpu.memory_space<vmem>>, vector<1x2x7xi32>,
      %81 = arith.addf %69, %63 : vector<2x7xf32>
      %82 = vector.shape_cast %60 : vector<2x1xi1> to vector<2x1xi1>
      %83 = vector.broadcast %82 : vector<2x1xi1> to vector<2x7xi1>
      %84 = arith.select %83, %81, %arg22 : vector<2x7xi1>, vector<2x7xf32>
      scf.yield %84 : vector<2x7xf32>
    }
    %c8_i32_49 = arith.constant 8 : i32
    %46 = vector.extract_strided_slice %36 {offsets = [6, 0], sizes = [1, 7], strides = [1, 1]} : vector<7x7xf32> to vector<1x7xf32>
    %47 = vector.broadcast %46 : vector<1x7xf32> to vector<2x7xf32>
    %48 = arith.addf %45, %47 : vector<2x7xf32>
    %cst_50 = arith.constant dense<0xFF800000> : vector<2xf32>
    %49 = vector.multi_reduction <maximumf>, %48, %cst_50 [1] : vector<2x7xf32> to vector<2xf32>
    %50 = vector.shape_cast %49 : vector<2xf32> to vector<2x1xf32>
    %c0_51 = arith.constant 0 : index
    %c0_52 = arith.constant 0 : index
    %51 = vector.load %arg14[%c0_51, %c0_52] : memref<2x1xf32, #tpu.memory_space<vmem>>, vector<2x1xf32>
    tpu.vector_store %arg14[%c0_51, %c0_52], %50 {strides = array<i32>} : memref<2x1xf32, #tpu.memory_space<vmem>>, vector<2x1xf32>,
    %52 = vector.broadcast %50 : vector<2x1xf32> to vector<2x7xf32>
    %53 = arith.cmpf oge, %48, %52 : vector<2x7xf32>
    %c7_i32 = arith.constant 7 : i32
    %54 = vector.broadcast %c7_i32 : i32 to vector<2x7xi32>
    %55 = arith.select %53, %37, %54 : vector<2x7xi1>, vector<2x7xi32>
    %cst_53 = arith.constant dense<2147483647> : vector<2xi32>
    %56 = vector.multi_reduction <minsi>, %55, %cst_53 [1] : vector<2x7xi32> to vector<2xi32>
    %57 = vector.shape_cast %56 : vector<2xi32> to vector<2x1xi32>
    %c0_54 = arith.constant 0 : index
    %c0_55 = arith.constant 0 : index
    %58 = vector.load %arg15[%c0_54, %c0_55] : memref<2x1xi32, #tpu.memory_space<vmem>>, vector<2x1xi32>
    tpu.vector_store %arg15[%c0_54, %c0_55], %57 {strides = array<i32>} : memref<2x1xi32, #tpu.memory_space<vmem>>, vector<2x1xi32>,
    return
  }
  func.func @transform_0(%arg0: i32) -> (i32, i32, i32) {
    %c0_i32 = arith.constant 0 : i32
    %c0_i32_0 = arith.constant 0 : i32
    %c0_i32_1 = arith.constant 0 : i32
    return %arg0, %c0_i32, %c0_i32_0 : i32, i32, i32
  }
  func.func @transform_1(%arg0: i32) -> (i32, i32) {
    %c0_i32 = arith.constant 0 : i32
    %c0_i32_0 = arith.constant 0 : i32
    return %arg0, %c0_i32 : i32, i32
  }
  func.func @transform_2(%arg0: i32) -> (i32, i32) {
    %c0_i32 = arith.constant 0 : i32
    %c0_i32_0 = arith.constant 0 : i32
    %c0_i32_1 = arith.constant 0 : i32
    return %c0_i32, %c0_i32_0 : i32, i32
  }
  func.func @transform_3(%arg0: i32) -> (i32, i32) {
    %c0_i32 = arith.constant 0 : i32
    %c0_i32_0 = arith.constant 0 : i32
    %c0_i32_1 = arith.constant 0 : i32
    return %c0_i32, %c0_i32_0 : i32, i32
  }
  func.func @transform_4(%arg0: i32) -> (i32, i32) {
    %c0_i32 = arith.constant 0 : i32
    %c0_i32_0 = arith.constant 0 : i32
    %c0_i32_1 = arith.constant 0 : i32
    return %c0_i32, %c0_i32_0 : i32, i32
  }
  func.func @transform_5(%arg0: i32) -> (i32, i32) {
    %c0_i32 = arith.constant 0 : i32
    %c0_i32_0 = arith.constant 0 : i32
    %c0_i32_1 = arith.constant 0 : i32
    return %c0_i32, %c0_i32_0 : i32, i32
  }
  func.func @transform_6(%arg0: i32) -> (i32, i32) {
    %c0_i32 = arith.constant 0 : i32
    %c0_i32_0 = arith.constant 0 : i32
    %c0_i32_1 = arith.constant 0 : i32
    return %c0_i32, %c0_i32_0 : i32, i32
  }
  func.func @transform_7(%arg0: i32) -> (i32, i32) {
    %c0_i32 = arith.constant 0 : i32
    %c0_i32_0 = arith.constant 0 : i32
    %c0_i32_1 = arith.constant 0 : i32
    return %c0_i32, %c0_i32_0 : i32, i32
  }
  func.func @transform_8(%arg0: i32) -> (i32, i32) {
    %c0_i32 = arith.constant 0 : i32
    %c0_i32_0 = arith.constant 0 : i32
    %c0_i32_1 = arith.constant 0 : i32
    return %c0_i32, %c0_i32_0 : i32, i32
  }
  func.func @transform_9(%arg0: i32) -> (i32, i32) {
    %c0_i32 = arith.constant 0 : i32
    %c0_i32_0 = arith.constant 0 : i32
    %c0_i32_1 = arith.constant 0 : i32
    return %c0_i32, %c0_i32_0 : i32, i32
  }
  func.func @transform_10(%arg0: i32) -> (i32, i32) {
    %c0_i32 = arith.constant 0 : i32
    %c0_i32_0 = arith.constant 0 : i32
    %c0_i32_1 = arith.constant 0 : i32
    return %c0_i32, %c0_i32_0 : i32, i32
  }
  func.func @transform_11(%arg0: i32) -> (i32, i32) {
    %c0_i32 = arith.constant 0 : i32
    %c0_i32_0 = arith.constant 0 : i32
    %c0_i32_1 = arith.constant 0 : i32
    return %c0_i32, %c0_i32_0 : i32, i32
  }
  func.func @transform_12(%arg0: i32) -> (i32, i32, i32) {
    %c0_i32 = arith.constant 0 : i32
    %c0_i32_0 = arith.constant 0 : i32
    %c0_i32_1 = arith.constant 0 : i32
    return %arg0, %c0_i32, %c0_i32_0 : i32, i32, i32
  }
  func.func @transform_13(%arg0: i32) -> (i32, i32) {
    %c0_i32 = arith.constant 0 : i32
    %c0_i32_0 = arith.constant 0 : i32
    return %arg0, %c0_i32 : i32, i32
  }
  func.func @transform_14(%arg0: i32) -> (i32, i32) {
    %c0_i32 = arith.constant 0 : i32
    %c0_i32_0 = arith.constant 0 : i32
    return %arg0, %c0_i32 : i32, i32
  }
}

</mosaic_0001>

<llo_original>
// kernel: tpu_custom_call.1
$region0: #{tpu_custom_call.1}
  #allocation0 [shape = 'u32[]', space=smem, size = 0x4, offset = 0x4, fixed_abs, tag = 'smem constant byte address 0x4 - core index']
  #allocation1 [shape = 'u32[72,128]{1,0:T(1,128)}', space=vmem, size = 0x9000, scoped, tag = 'internal scratch']
  #allocation2 [shape = 'f32[16,64]{1,0:T(8,128)}', space=vmem, size = 0x2000, scoped, tag = 'scratch operand']
  #allocation3 [shape = 'f32[16,64]{1,0:T(8,128)}', space=vmem, size = 0x2000, scoped, tag = 'scratch operand']
  #allocation4 [shape = 'f32[16,16]{1,0:T(8,128)}', space=vmem, size = 0x2000, scoped, tag = 'scratch operand']
  #allocation5 [shape = 'f32[16,16]{1,0:T(8,128)}', space=vmem, size = 0x2000, scoped, tag = 'scratch operand']
  #allocation6 [shape = 'f32[16,7]{1,0:T(8,128)}', space=vmem, size = 0x2000, scoped, tag = 'scratch operand']
  %s0 = inlined_call_operand.vmem [shape: bf16[1,16,16], index: 0, kind: input, shape index: {}]
  %s1 = inlined_call_operand.vmem [shape: s32[2,1], index: 1, kind: input, shape index: {}]
  %s2 = inlined_call_operand.vmem [shape: bf16[16,64], index: 2, kind: input, shape index: {}]
  %s3 = inlined_call_operand.hbm [shape: bf16[16,64], index: 3, kind: input, shape index: {}]
  %s4 = inlined_call_operand.vmem [shape: f32[1,64], index: 4, kind: input, shape index: {}]
  %s5 = inlined_call_operand.hbm [shape: bf16[16,64], index: 5, kind: input, shape index: {}]
  %s6 = inlined_call_operand.hbm [shape: bf16[16,64], index: 6, kind: input, shape index: {}]
  %s7 = inlined_call_operand.vmem [shape: f32[1,64], index: 7, kind: input, shape index: {}]
  %s8 = inlined_call_operand.vmem [shape: bf16[16,7], index: 8, kind: input, shape index: {}]
  %s9 = inlined_call_operand.vmem [shape: bf16[16,7], index: 9, kind: input, shape index: {}]
  %s10 = inlined_call_operand.vmem [shape: f32[1,7], index: 10, kind: input, shape index: {}]
  %s11 = inlined_call_operand.vmem [shape: f32[7,7], index: 11, kind: input, shape index: {}]
  %s12 = inlined_call_operand.vmem [shape: s32[1,16,7], index: 12, kind: output, shape index: {0}]
  %s13 = inlined_call_operand.vmem [shape: f32[2,1], index: 13, kind: output, shape index: {1}]
  %s14 = inlined_call_operand.vmem [shape: s32[2,1], index: 14, kind: output, shape index: {2}]
  %15 = xla_tuple %s12, %s13, %s14
  %s16 = sld [smem:[#allocation0]]
  $region107: #{tpu_custom_call.1} parent=0
    _
  %s18 = ssub.s32 1, %s16
  %s19 = scalar_select 0, %s18, %s16
  $region1: #{tpu_custom_call.1} parent=0
    #allocation7 [shape = 'u8[4096]{0}', space=vmem, size = 0x1000, scoped, tag = 'input window, operand 3, single buffered']
    #allocation8 [shape = 's32[1]{0}', space=sflag, size = 0x4, scoped, tag = 'scoped memory for tpu_custom_call.1']
    #allocation9 [shape = 'u8[4096]{0}', space=vmem, size = 0x1000, scoped, tag = 'input window, operand 5, single buffered']
    #allocation10 [shape = 's32[1]{0}', space=sflag, size = 0x4, scoped, tag = 'scoped memory for tpu_custom_call.1']
    #allocation11 [shape = 'u8[4096]{0}', space=vmem, size = 0x1000, scoped, tag = 'input window, operand 6, single buffered']
    %20 = vsyncpa [#allocation8], 0
    %21 = vsyncpa [#allocation10], 0
    // Predicated region
    $region2: #{tpu_custom_call.1} parent=1 // pred_check
      _
    $region3: #{tpu_custom_call.1} parent=1 // pred_check_branch
      %23 = sbr.rel (0) target = $region5
    $region4: #{tpu_custom_call.1} parent=1 // pred_region
      _
    $region5: #{tpu_custom_call.1} parent=1 // pred_fallthru
      _
    // Predicated region
    $region6: #{tpu_custom_call.1} parent=1 // pred_check
      _
    $region7: #{tpu_custom_call.1} parent=1 // pred_check_branch
      %25 = sbr.rel (0) target = $region9
    $region8: #{tpu_custom_call.1} parent=1 // pred_region
      _
    $region9: #{tpu_custom_call.1} parent=1 // pred_fallthru
      _
    // Predicated region
    $region10: #{tpu_custom_call.1} parent=1 // pred_check
      _
    $region11: #{tpu_custom_call.1} parent=1 // pred_check_branch
      %27 = sbr.rel (0) target = $region13
    $region12: #{tpu_custom_call.1} parent=1 // pred_region
      _
    $region13: #{tpu_custom_call.1} parent=1 // pred_fallthru
      _
    // Predicated region
    $region14: #{tpu_custom_call.1} parent=1 // pred_check
      _
    $region15: #{tpu_custom_call.1} parent=1 // pred_check_branch
      %29 = sbr.rel (0) target = $region17
    $region16: #{tpu_custom_call.1} parent=1 // pred_region
      %31 = vsyncadd [#allocation8], 0
      %s32 = sshll.u32 %s3, 4
      %s33 = int_to_ptr.hbm [resolvable:$true] %s32
      %s34 = sshll.u32 [#allocation7], 4
      %s35 = int_to_ptr.vmem [resolvable:$true] %s34
      %40 = dma.hbm_to_vmem [thread:$0]  %s33, 128, %s35, [#allocation8], 64, 64, 4
    $region17: #{tpu_custom_call.1} parent=1 // pred_fallthru
      _
    // Predicated region
    $region18: #{tpu_custom_call.1} parent=1 // pred_check
      _
    $region19: #{tpu_custom_call.1} parent=1 // pred_check_branch
      %42 = sbr.rel (0) target = $region21
    $region20: #{tpu_custom_call.1} parent=1 // pred_region
      _
    $region21: #{tpu_custom_call.1} parent=1 // pred_fallthru
      _
    // Predicated region
    $region22: #{tpu_custom_call.1} parent=1 // pred_check
      _
    $region23: #{tpu_custom_call.1} parent=1 // pred_check_branch
      %44 = sbr.rel (0) target = $region25
    $region24: #{tpu_custom_call.1} parent=1 // pred_region
      %46 = vsyncadd [#allocation10], 0
      %s47 = sshll.u32 %s5, 4
      %s48 = int_to_ptr.hbm [resolvable:$true] %s47
      %s49 = sshll.u32 [#allocation9], 4
      %s50 = int_to_ptr.vmem [resolvable:$true] %s49
      %55 = dma.hbm_to_vmem [thread:$0]  %s48, 128, %s50, [#allocation10], 64, 64, 4
    $region25: #{tpu_custom_call.1} parent=1 // pred_fallthru
      _
    // Predicated region
    $region26: #{tpu_custom_call.1} parent=1 // pred_check
      _
    $region27: #{tpu_custom_call.1} parent=1 // pred_check_branch
      %57 = sbr.rel (0) target = $region29
    $region28: #{tpu_custom_call.1} parent=1 // pred_region
      %59 = vsyncadd [#allocation10], 0
      %s60 = sshll.u32 %s6, 4
      %s61 = int_to_ptr.hbm [resolvable:$true] %s60
      %s62 = sshll.u32 [#allocation11], 4
      %s63 = int_to_ptr.vmem [resolvable:$true] %s62
      %68 = dma.hbm_to_vmem [thread:$0]  %s61, 128, %s63, [#allocation10], 64, 64, 4
    $region29: #{tpu_custom_call.1} parent=1 // pred_fallthru
      _
    // Predicated region
    $region30: #{tpu_custom_call.1} parent=1 // pred_check
      _
    $region31: #{tpu_custom_call.1} parent=1 // pred_check_branch
      %70 = sbr.rel (0) target = $region33
    $region32: #{tpu_custom_call.1} parent=1 // pred_region
      _
    $region33: #{tpu_custom_call.1} parent=1 // pred_fallthru
      _
    // Predicated region
    $region34: #{tpu_custom_call.1} parent=1 // pred_check
      _
    $region35: #{tpu_custom_call.1} parent=1 // pred_check_branch
      %72 = sbr.rel (0) target = $region37
    $region36: #{tpu_custom_call.1} parent=1 // pred_region
      _
    $region37: #{tpu_custom_call.1} parent=1 // pred_fallthru
      _
    // Predicated region
    $region38: #{tpu_custom_call.1} parent=1 // pred_check
      _
    $region39: #{tpu_custom_call.1} parent=1 // pred_check_branch
      %74 = sbr.rel (0) target = $region41
    $region40: #{tpu_custom_call.1} parent=1 // pred_region
      _
    $region41: #{tpu_custom_call.1} parent=1 // pred_fallthru
      _
    // Predicated region
    $region42: #{tpu_custom_call.1} parent=1 // pred_check
      _
    $region43: #{tpu_custom_call.1} parent=1 // pred_check_branch
      %76 = sbr.rel (0) target = $region45
    $region44: #{tpu_custom_call.1} parent=1 // pred_region
      _
    $region45: #{tpu_custom_call.1} parent=1 // pred_fallthru
      _
    // Predicated region
    $region46: #{tpu_custom_call.1} parent=1 // pred_check
      _
    $region47: #{tpu_custom_call.1} parent=1 // pred_check_branch
      %78 = sbr.rel (0) target = $region49
    $region48: #{tpu_custom_call.1} parent=1 // pred_region
      _
    $region49: #{tpu_custom_call.1} parent=1 // pred_fallthru
      _
    // Predicated region
    $region50: #{tpu_custom_call.1} parent=1 // pred_check
      _
    $region51: #{tpu_custom_call.1} parent=1 // pred_check_branch
      %80 = sbr.rel (0) target = $region53
    $region52: #{tpu_custom_call.1} parent=1 // pred_region
      %82 = dma.done [#allocation8], 128
    $region53: #{tpu_custom_call.1} parent=1 // pred_fallthru
      _
    // Predicated region
    $region54: #{tpu_custom_call.1} parent=1 // pred_check
      _
    $region55: #{tpu_custom_call.1} parent=1 // pred_check_branch
      %84 = sbr.rel (0) target = $region57
    $region56: #{tpu_custom_call.1} parent=1 // pred_region
      %86 = dma.done [#allocation10], 128
    $region57: #{tpu_custom_call.1} parent=1 // pred_fallthru
      _
    // Predicated region
    $region58: #{tpu_custom_call.1} parent=1 // pred_check
      _
    $region59: #{tpu_custom_call.1} parent=1 // pred_check_branch
      %88 = sbr.rel (0) target = $region61
    $region60: #{tpu_custom_call.1} parent=1 // pred_region
      %90 = dma.done [#allocation10], 128
    $region61: #{tpu_custom_call.1} parent=1 // pred_fallthru
      _
    %v92 = vld [vmem:[%s1] sm:$0x3]
    %v93 = vld [vmem:[%s0] sm:$0xf]
    %v94 = vld [vmem:[%s0 + $0x4] sm:$0xf]
    %v95 = vld [vmem:[%s2] sm:$0xf]
    %v96 = vld [vmem:[%s2 + $0x4] sm:$0xf]
    %v97 = vld [vmem:[%s4] sm:$0x1]
    %v99 = vperm.slane %v97, 0
    %v103 = vunpack.c.l.b16 %v93
    %v104 = vunpack.c.l.b16 %v94
    %v105 = vpack.c.b16 %v104, %v103
    %v108 = vunpack.c.l.b16 %v95
    %v109 = vunpack.c.l.b16 %v96
    %v110 = vpack.c.b16 %v109, %v108
    %vm112 = vcmask 130048
    %v114 = vsel %vm112, %v105, 0
    %116 = vmatpush.bf16.msra.mxu0 0
    %117 = vmatpush.bf16.msra.mxu0 0
    %118 = vmatpush.bf16.msra.mxu0 0
    %119 = vmatpush.bf16.msra.mxu0 0
    %120 = vmatpush.bf16.msra.mxu0 0
    %121 = vmatpush.bf16.msra.mxu0 0
    %122 = vmatpush.bf16.msra.mxu0 0
    %123 = vmatpush.bf16.msra.mxu0 %v110
    %124 = vmatmul.bf16.gmra.mxu0 %v114
    %v125 = vpop.f32.mrf.mxu0
    %v126 = vadd.f32 %v99, %v125
    %v127 = vpop.f32.mrf.mxu0
    %v128 = vadd.f32 %v99, %v127
    %129 = vdwg.mxu0
    %vm130 = vcmask 523264
    %131 = vst.msk [vmem:[#allocation2] sm:$0xff] %vm130, %v126
    %132 = vst.msk [vmem:[#allocation2 + $0x8] sm:$0xff] %vm130, %v128
    %v133 = vld [vmem:[#allocation9] sm:$0xf]
    %v134 = vld [vmem:[#allocation9 + $0x4] sm:$0xf]
    %v135 = vld [vmem:[%s7] sm:$0x1]
    %v137 = vperm.slane %v135, 0
    %v141 = vunpack.c.l.b16 %v133
    %v142 = vunpack.c.l.b16 %v134
    %v143 = vpack.c.b16 %v142, %v141
    %145 = vmatpush.bf16.msra.mxu0 0
    %146 = vmatpush.bf16.msra.mxu0 0
    %147 = vmatpush.bf16.msra.mxu0 0
    %148 = vmatpush.bf16.msra.mxu0 0
    %149 = vmatpush.bf16.msra.mxu0 0
    %150 = vmatpush.bf16.msra.mxu0 0
    %151 = vmatpush.bf16.msra.mxu0 0
    %152 = vmatpush.bf16.msra.mxu0 %v143
    %153 = vmatmul.bf16.gmra.mxu0 %v114
    %v154 = vpop.f32.mrf.mxu0
    %v155 = vadd.f32 %v137, %v154
    %v156 = vpop.f32.mrf.mxu0
    %v157 = vadd.f32 %v137, %v156
    %158 = vdwg.mxu0
    %159 = vst.msk [vmem:[#allocation3] sm:$0xff] %vm130, %v155
    %160 = vst.msk [vmem:[#allocation3 + $0x8] sm:$0xff] %vm130, %v157
    %v161 = vld [vmem:[#allocation7] sm:$0xf]
    %v162 = vld [vmem:[#allocation7 + $0x4] sm:$0xf]
    %v163 = vld [vmem:[#allocation11] sm:$0xf]
    %v164 = vld [vmem:[#allocation11 + $0x4] sm:$0xf]
    loop: start=0, step=1, limit=8
    $region62: #{tpu_custom_call.1} parent=1 // loop_pre_header
      _
    $region63: #{tpu_custom_call.1} parent=1 // loop_header
      %s166 = sphi 0, %s170
      %p167 = scmp.ge.s32.totalorder %s166, 8
      %v171 = vphi 0.0, %v247
      %v172 = vphi 0.0, %v248
    $region64: #{tpu_custom_call.1} parent=1 // loop_header_branch
      %169 = sbr.rel (%p167) target = $region68
    $region65: #{tpu_custom_call.1} parent=1 // loop_body
      %v173 = vstv %s166
      %vm174 = vcmp.gt.s32.totalorder %v92, %v173
      %s175 = smul.u32 %s166, 2
      %s176 = scalar_lea.vmem [#allocation2], %s175
      %v177 = vld [vmem:[%s176] sm:$0x3]
      %v178 = vpack.c.bf16 %v171, %v171
      %180 = vrot.lane.b32.xlu0 %v178, 80
      %v181 = vpop.permute.xlu0 %180
      %v184 = vunpack.c.l.b16 %v161
      %v185 = vunpack.c.l.b16 %v162
      %v186 = vpack.c.b16 %v185, %v184
      %v189 = vsel %vm112, %v181, 0
      %191 = vmatpush.bf16.msra.mxu0 0
      %192 = vmatpush.bf16.msra.mxu0 0
      %193 = vmatpush.bf16.msra.mxu0 0
      %194 = vmatpush.bf16.msra.mxu0 0
      %195 = vmatpush.bf16.msra.mxu0 0
      %196 = vmatpush.bf16.msra.mxu0 0
      %197 = vmatpush.bf16.msra.mxu0 0
      %198 = vmatpush.bf16.msra.mxu0 %v186
      %199 = vmatmul.bf16.gmra.mxu0 %v189
      %v200 = vpop.f32.mrf.mxu0
      %v201 = vadd.f32 0.0, %v200
      %v202 = vpop.f32.mrf.mxu0
      %203 = vdwg.mxu0
      %v204 = vadd.f32 %v177, %v201
      %v205 = vxor.u32 %v204, 2147483648
      %v206 = vmul.f32 %v205, 1.442695
      %v207 = vpow.pop %v206
      %v208 = vadd.f32 %v207, 1.0
      %v209 = vrcp.pop %v208
      %v210 = vmul.f32 %v208, %v209
      %v211 = vsub.f32 1.0, %v210
      %v212 = vmul.f32 %v209, %v211
      %v213 = vadd.f32 %v209, %v212
      %vm214 = vweird.f32 %v208
      %vm215 = vweird.f32 %v209
      %vm216 = vmor %vm214, %vm215
      %v217 = vsel %vm216, %v209, %v213
      %v218 = vand.u32 2147483647, %v208
      %vm219 = vcmp.eq.f32.partialorder %v218, 8.507059e+37
      %v220 = vand.u32 %v208, 2147483648
      %v221 = vor.u32 1.1754944e-38, %v220
      %v222 = vsel %vm219, %v221, %v217
      %v223 = vmul.f32 1.0, %v222
      %v224 = vtanh.pop %v204
      %v225 = vmul.f32 %v223, %v172
      %227 = vrot.lane.b32.xlu0 %v224, 96
      %v228 = vpop.permute.xlu0 %227
      %v230 = vmul.f32 %v223, %v228
      %232 = vrot.lane.b32.xlu0 %v230, 16
      %v233 = vpop.permute.xlu0 %232
      %v235 = vadd.f32 %v225, %v233
      %v236 = vtanh.pop %v235
      %238 = vrot.lane.b32.xlu0 %v236, 32
      %v239 = vpop.permute.xlu0 %238
      %v241 = vmul.f32 %v223, %v239
      %v242 = vsel %vm174, 1, 0
      %243 = vset.pattern.permute.xlu0 0
      %244 = vperm.xlu0 %243, %v242
      %v245 = vpop.permute.xlu0 %244
      %vm246 = vcmp.eq.s32.totalorder %v245, 1
      %v247 = vsel %vm246, %v241, %v171
      %v248 = vsel %vm246, %v235, %v172
      %v249 = vsel %vm246, %v241, 0.0
      %251 = vrot.lane.b32.xlu0 %v249, 80
      %v252 = vpop.permute.xlu0 %251
      %s254 = scalar_lea.vmem [#allocation4], %s175
      %vm255 = vcmask 123904
      %256 = vst.msk [vmem:[%s254] sm:$0x3] %vm255, %v252
    $region66: #{tpu_custom_call.1} parent=1 // loop_footer
      %s170 = sadd.s32 1, %s166
    $region67: #{tpu_custom_call.1} parent=1 // loop_footer_branch
      %165 = sbr.rel target = $region63
    $region68: #{tpu_custom_call.1} parent=1 // loop_exit
      _
    loop: start=0, step=1, limit=8
    $region69: #{tpu_custom_call.1} parent=1 // loop_pre_header
      _
    $region70: #{tpu_custom_call.1} parent=1 // loop_header
      %s258 = sphi 0, %s262
      %p259 = scmp.ge.s32.totalorder %s258, 8
      %v263 = vphi 0.0, %v340
      %v264 = vphi 0.0, %v341
    $region71: #{tpu_custom_call.1} parent=1 // loop_header_branch
      %261 = sbr.rel (%p259) target = $region75
    $region72: #{tpu_custom_call.1} parent=1 // loop_body
      %s265 = ssub.s32 7, %s258
      %v266 = vstv %s265
      %vm267 = vcmp.gt.s32.totalorder %v92, %v266
      %s268 = smul.u32 %s265, 2
      %s269 = scalar_lea.vmem [#allocation3], %s268
      %v270 = vld [vmem:[%s269] sm:$0x3]
      %v271 = vpack.c.bf16 %v263, %v263
      %273 = vrot.lane.b32.xlu0 %v271, 80
      %v274 = vpop.permute.xlu0 %273
      %v277 = vunpack.c.l.b16 %v163
      %v278 = vunpack.c.l.b16 %v164
      %v279 = vpack.c.b16 %v278, %v277
      %v282 = vsel %vm112, %v274, 0
      %284 = vmatpush.bf16.msra.mxu0 0
      %285 = vmatpush.bf16.msra.mxu0 0
      %286 = vmatpush.bf16.msra.mxu0 0
      %287 = vmatpush.bf16.msra.mxu0 0
      %288 = vmatpush.bf16.msra.mxu0 0
      %289 = vmatpush.bf16.msra.mxu0 0
      %290 = vmatpush.bf16.msra.mxu0 0
      %291 = vmatpush.bf16.msra.mxu0 %v279
      %292 = vmatmul.bf16.gmra.mxu0 %v282
      %v293 = vpop.f32.mrf.mxu0
      %v294 = vadd.f32 0.0, %v293
      %v295 = vpop.f32.mrf.mxu0
      %296 = vdwg.mxu0
      %v297 = vadd.f32 %v270, %v294
      %v298 = vxor.u32 %v297, 2147483648
      %v299 = vmul.f32 %v298, 1.442695
      %v300 = vpow.pop %v299
      %v301 = vadd.f32 %v300, 1.0
      %v302 = vrcp.pop %v301
      %v303 = vmul.f32 %v301, %v302
      %v304 = vsub.f32 1.0, %v303
      %v305 = vmul.f32 %v302, %v304
      %v306 = vadd.f32 %v302, %v305
      %vm307 = vweird.f32 %v301
      %vm308 = vweird.f32 %v302
      %vm309 = vmor %vm307, %vm308
      %v310 = vsel %vm309, %v302, %v306
      %v311 = vand.u32 2147483647, %v301
      %vm312 = vcmp.eq.f32.partialorder %v311, 8.507059e+37
      %v313 = vand.u32 %v301, 2147483648
      %v314 = vor.u32 1.1754944e-38, %v313
      %v315 = vsel %vm312, %v314, %v310
      %v316 = vmul.f32 1.0, %v315
      %v317 = vtanh.pop %v297
      %v318 = vmul.f32 %v316, %v264
      %320 = vrot.lane.b32.xlu0 %v317, 96
      %v321 = vpop.permute.xlu0 %320
      %v323 = vmul.f32 %v316, %v321
      %325 = vrot.lane.b32.xlu0 %v323, 16
      %v326 = vpop.permute.xlu0 %325
      %v328 = vadd.f32 %v318, %v326
      %v329 = vtanh.pop %v328
      %331 = vrot.lane.b32.xlu0 %v329, 32
      %v332 = vpop.permute.xlu0 %331
      %v334 = vmul.f32 %v316, %v332
      %v335 = vsel %vm267, 1, 0
      %336 = vset.pattern.permute.xlu0 0
      %337 = vperm.xlu0 %336, %v335
      %v338 = vpop.permute.xlu0 %337
      %vm339 = vcmp.eq.s32.totalorder %v338, 1
      %v340 = vsel %vm339, %v334, %v263
      %v341 = vsel %vm339, %v328, %v264
      %v342 = vsel %vm339, %v334, 0.0
      %344 = vrot.lane.b32.xlu0 %v342, 80
      %v345 = vpop.permute.xlu0 %344
      %s347 = scalar_lea.vmem [#allocation5], %s268
      %vm348 = vcmask 123904
      %349 = vst.msk [vmem:[%s347] sm:$0x3] %vm348, %v345
    $region73: #{tpu_custom_call.1} parent=1 // loop_footer
      %s262 = sadd.s32 1, %s258
    $region74: #{tpu_custom_call.1} parent=1 // loop_footer_branch
      %257 = sbr.rel target = $region70
    $region75: #{tpu_custom_call.1} parent=1 // loop_exit
      _
    %v350 = vld [vmem:[#allocation4] sm:$0xff]
    %v351 = vld [vmem:[#allocation4 + $0x8] sm:$0xff]
    %v352 = vpack.c.bf16 %v351, %v350
    %v353 = vld [vmem:[%s8] sm:$0xf]
    %v354 = vld [vmem:[%s8 + $0x4] sm:$0xf]
    %v355 = vld [vmem:[#allocation5] sm:$0xff]
    %v356 = vld [vmem:[#allocation5 + $0x8] sm:$0xff]
    %v357 = vpack.c.bf16 %v356, %v355
    %v358 = vld [vmem:[%s9] sm:$0xf]
    %v359 = vld [vmem:[%s9 + $0x4] sm:$0xf]
    %v362 = vunpack.c.l.b16 %v358
    %v363 = vunpack.c.l.b16 %v359
    %v364 = vpack.c.b16 %v363, %v362
    %v367 = vsel %vm112, %v357, 0
    %369 = vmatpush.bf16.msra.mxu0 0
    %370 = vmatpush.bf16.msra.mxu0 0
    %371 = vmatpush.bf16.msra.mxu0 0
    %372 = vmatpush.bf16.msra.mxu0 0
    %373 = vmatpush.bf16.msra.mxu0 0
    %374 = vmatpush.bf16.msra.mxu0 0
    %375 = vmatpush.bf16.msra.mxu0 0
    %376 = vmatpush.bf16.msra.mxu0 %v364
    %377 = vmatmul.bf16.gmra.mxu0 %v367
    %v378 = vpop.f32.mrf.mxu0
    %v379 = vadd.f32 0.0, %v378
    %v380 = vpop.f32.mrf.mxu0
    %v381 = vadd.f32 0.0, %v380
    %382 = vdwg.mxu0
    %v385 = vunpack.c.l.b16 %v353
    %v386 = vunpack.c.l.b16 %v354
    %v387 = vpack.c.b16 %v386, %v385
    %v390 = vsel %vm112, %v352, 0
    %392 = vmatpush.bf16.msra.mxu0 0
    %393 = vmatpush.bf16.msra.mxu0 0
    %394 = vmatpush.bf16.msra.mxu0 0
    %395 = vmatpush.bf16.msra.mxu0 0
    %396 = vmatpush.bf16.msra.mxu0 0
    %397 = vmatpush.bf16.msra.mxu0 0
    %398 = vmatpush.bf16.msra.mxu0 0
    %399 = vmatpush.bf16.msra.mxu0 %v387
    %400 = vmatmul.bf16.gmra.mxu0 %v390
    %v401 = vpop.f32.mrf.mxu0
    %v402 = vadd.f32 %v379, %v401
    %v403 = vpop.f32.mrf.mxu0
    %v404 = vadd.f32 %v381, %v403
    %405 = vdwg.mxu0
    %v406 = vld [vmem:[%s10] sm:$0x1]
    %v408 = vperm.slane %v406, 0
    %v410 = vadd.f32 %v402, %v408
    %v411 = vadd.f32 %v404, %v408
    %vm412 = vcmask 56320
    %413 = vst.msk [vmem:[#allocation6] sm:$0xff] %vm412, %v410
    %414 = vst.msk [vmem:[#allocation6 + $0x8] sm:$0xff] %vm412, %v411
    %v415 = vld [vmem:[%s11] sm:$0x7f]
    %v416 = vlaneseq
    %v417 = vand.u32 %v416, 127
    %vm418 = vcmp.eq.s32.totalorder %v417, 5
    %v419 = vsel %vm418, 0.0, -10000.0
    loop: start=0, step=1, limit=8
    $region76: #{tpu_custom_call.1} parent=1 // loop_pre_header
      _
    $region77: #{tpu_custom_call.1} parent=1 // loop_header
      %s421 = sphi 0, %s425
      %p422 = scmp.ge.s32.totalorder %s421, 8
      %v426 = vphi %v419, %v524
    $region78: #{tpu_custom_call.1} parent=1 // loop_header_branch
      %424 = sbr.rel (%p422) target = $region82
    $region79: #{tpu_custom_call.1} parent=1 // loop_body
      %v427 = vstv %s421
      %vm428 = vcmp.gt.s32.totalorder %v92, %v427
      %s429 = smul.u32 %s421, 2
      %s430 = scalar_lea.vmem [#allocation6], %s429
      %v431 = vld [vmem:[%s430] sm:$0x3]
      %v433 = vrot.slane %v426, 1
      %v434 = vperm.slane %v426, 0
      %v435 = vperm.slane %v433, 0
      %v438 = vadd.f32 %v434, %v415
      %v439 = vadd.f32 %v435, %v415
      %vm440 = vcmask 55296
      %v441 = vsel %vm440, %v438, -inf
      %442 = vmax.xlane.f32.xlu0 %v441
      %v443 = vpop.xlane.xlu0 %442
      %v444 = vsel %vm440, %v439, -inf
      %445 = vmax.xlane.f32.xlu0 %v444
      %v446 = vpop.xlane.xlu0 %445
      %vm447 = vcmp.ge.f32.partialorder %v438, %v443
      %vm448 = vcmp.ge.f32.partialorder %v439, %v446
      %v449 = vsel %vm447, %v417, 7
      %v450 = vsel %vm448, %v417, 7
      %v451 = vsel %vm440, %v449, 2147483647
      %v452 = vand.u32 %v451, 65535
      %v453 = vshra.s32 %v451, 16
      %v454 = vcvt.s32.f32 %v452
      %v455 = vcvt.s32.f32 %v453
      %456 = vmin.xlane.f32.xlu0 %v455
      %v457 = vpop.xlane.xlu0 %456
      %vm458 = vcmp.eq.f32.partialorder %v455, %v457
      %v459 = vsel %vm458, %v454, inf
      %460 = vmin.xlane.f32.xlu0 %v459
      %v461 = vpop.xlane.xlu0 %460
      %v462 = vcvt.f32.s32 %v461
      %v463 = vcvt.f32.s32 %v457
      %v464 = vshll.u32 %v463, 16
      %v465 = vadd.s32 %v464, %v462
      %v466 = vsel %vm440, %v450, 2147483647
      %v467 = vand.u32 %v466, 65535
      %v468 = vshra.s32 %v466, 16
      %v469 = vcvt.s32.f32 %v467
      %v470 = vcvt.s32.f32 %v468
      %471 = vmin.xlane.f32.xlu0 %v470
      %v472 = vpop.xlane.xlu0 %471
      %vm473 = vcmp.eq.f32.partialorder %v470, %v472
      %v474 = vsel %vm473, %v469, inf
      %475 = vmin.xlane.f32.xlu0 %v474
      %v476 = vpop.xlane.xlu0 %475
      %v477 = vcvt.f32.s32 %v476
      %v478 = vcvt.f32.s32 %v472
      %v479 = vshll.u32 %v478, 16
      %v480 = vadd.s32 %v479, %v477
      %v481 = vperm.slane %v465, %v417
      %v482 = vperm.slane %v480, %v417
      %vm483 = vcmask 1041409
      %v484 = vsel %vm483, %v482, %v481
      %s485 = scalar_lea.vmem %s12, %s429
      %vm486 = vcmask 50176
      %487 = vst.msk [vmem:[%s485] sm:$0x3] %vm486, %v484
      %v489 = vperm.slane %v431, 0
      %v490 = vlaneseq
      %v491 = vshrl.u32 %v490, 7
      %493 = vset.pattern.permute.xlu0 %v491
      %494 = vperm.xlu0 %493, %v489
      %v495 = vpop.permute.xlu0 %494
      %v496 = vperm.slane %v431, 1
      %v497 = vlaneseq
      %v498 = vshrl.u32 %v497, 7
      %500 = vset.pattern.permute.xlu0 %v498
      %501 = vperm.xlu0 %500, %v496
      %v502 = vpop.permute.xlu0 %501
      %v505 = vadd.f32 %v443, %v495
      %v506 = vadd.f32 %v446, %v502
      %v507 = vsel %vm428, 1, 0
      %508 = vset.pattern.permute.xlu0 0
      %509 = vperm.xlu0 %508, %v507
      %v510 = vpop.permute.xlu0 %509
      %vm511 = vcmp.eq.s32.totalorder %v510, 1
      %514 = vset.pattern.permute.xlu0 0
      %515 = vperm.xlu0 %514, %v505
      %v516 = vpop.permute.xlu0 %515
      %517 = vset.pattern.permute.xlu0 0
      %518 = vperm.xlu0 %517, %v506
      %v519 = vpop.permute.xlu0 %518
      %v520 = vperm.slane %v516, %v417
      %v521 = vperm.slane %v519, %v417
      %v522 = vsel %vm483, %v521, %v520
      %v524 = vsel %vm511, %v522, %v426
    $region80: #{tpu_custom_call.1} parent=1 // loop_footer
      %s425 = sadd.s32 1, %s421
    $region81: #{tpu_custom_call.1} parent=1 // loop_footer_branch
      %420 = sbr.rel target = $region77
    $region82: #{tpu_custom_call.1} parent=1 // loop_exit
      _
    %v525 = vperm.slane %v415, 6
    %v526 = vadd.f32 %v426, %v525
    %vm527 = vcmask 50176
    %v528 = vsel %vm527, %v526, -inf
    %529 = vmax.xlane.f32.xlu0 %v528
    %v530 = vpop.xlane.xlu0 %529
    %vm531 = vcmask 1024
    %532 = vst.msk [vmem:[%s13] sm:$0x3] %vm531, %v530
    %vm533 = vcmp.ge.f32.partialorder %v526, %v530
    %v534 = vsel %vm533, %v417, 7
    %v535 = vsel %vm527, %v534, 2147483647
    %v536 = vand.u32 %v535, 65535
    %v537 = vshra.s32 %v535, 16
    %v538 = vcvt.s32.f32 %v536
    %v539 = vcvt.s32.f32 %v537
    %540 = vmin.xlane.f32.xlu0 %v539
    %v541 = vpop.xlane.xlu0 %540
    %vm542 = vcmp.eq.f32.partialorder %v539, %v541
    %v543 = vsel %vm542, %v538, inf
    %544 = vmin.xlane.f32.xlu0 %v543
    %v545 = vpop.xlane.xlu0 %544
    %v546 = vcvt.f32.s32 %v545
    %v547 = vcvt.f32.s32 %v541
    %v548 = vshll.u32 %v547, 16
    %v549 = vadd.s32 %v548, %v546
    %550 = vst.msk [vmem:[%s14] sm:$0x3] %vm531, %v549
    // Predicated region
    $region83: #{tpu_custom_call.1} parent=1 // pred_check
      _
    $region84: #{tpu_custom_call.1} parent=1 // pred_check_branch
      %552 = sbr.rel (0) target = $region86
    $region85: #{tpu_custom_call.1} parent=1 // pred_region
      _
    $region86: #{tpu_custom_call.1} parent=1 // pred_fallthru
      _
    // Predicated region
    $region87: #{tpu_custom_call.1} parent=1 // pred_check
      _
    $region88: #{tpu_custom_call.1} parent=1 // pred_check_branch
      %554 = sbr.rel (0) target = $region90
    $region89: #{tpu_custom_call.1} parent=1 // pred_region
      _
    $region90: #{tpu_custom_call.1} parent=1 // pred_fallthru
      _
    // Predicated region
    $region91: #{tpu_custom_call.1} parent=1 // pred_check
      _
    $region92: #{tpu_custom_call.1} parent=1 // pred_check_branch
      %556 = sbr.rel (0) target = $region94
    $region93: #{tpu_custom_call.1} parent=1 // pred_region
      _
    $region94: #{tpu_custom_call.1} parent=1 // pred_fallthru
      _
    // Predicated region
    $region95: #{tpu_custom_call.1} parent=1 // pred_check
      _
    $region96: #{tpu_custom_call.1} parent=1 // pred_check_branch
      %558 = sbr.rel (0) target = $region98
    $region97: #{tpu_custom_call.1} parent=1 // pred_region
      _
    $region98: #{tpu_custom_call.1} parent=1 // pred_fallthru
      _
    // Predicated region
    $region99: #{tpu_custom_call.1} parent=1 // pred_check
      _
    $region100: #{tpu_custom_call.1} parent=1 // pred_check_branch
      %560 = sbr.rel (0) target = $region102
    $region101: #{tpu_custom_call.1} parent=1 // pred_region
      _
    $region102: #{tpu_custom_call.1} parent=1 // pred_fallthru
      _
    // Predicated region
    $region103: #{tpu_custom_call.1} parent=1 // pred_check
      _
    $region104: #{tpu_custom_call.1} parent=1 // pred_check_branch
      %562 = sbr.rel (0) target = $region106
    $region105: #{tpu_custom_call.1} parent=1 // pred_region
      _
    $region106: #{tpu_custom_call.1} parent=1 // pred_fallthru
      _
    %563 = vsyncpa [#allocation8], 1
    %564 = vsyncpa [#allocation10], 1

</llo_original>
